<compile_context>
chip_gen: v7x
topology: tpu7x:2x2x1
jax: 0.10.0
libtpu: 0.0.40
codegen_flags: <defaults>
</compile_context>

<pallas_src>
import jax
import jax.numpy as jnp
from jax import lax
from jax.experimental import pallas as pl
from jax.experimental.pallas import tpu as pltpu


def _mlp_kernel(x_ref, w1_ref, b1_ref, w2_ref, b2_ref, o_ref):
    # Hidden layer on the MXU: (TB, D) @ (D, H) -> (TB, H), f32 accumulate.
    h = jnp.dot(x_ref[...], w1_ref[...], preferred_element_type=jnp.float32)
    h = jnp.maximum(h + b1_ref[...], 0.0)                # bias + ReLU on the VPU

    # Output layer (out_features == 1): contract the H axes of w2 (1, H) and
    # h (TB, H) -> (1, TB).  Same pattern as q @ k^T; the MXU performs the
    # sublane->lane relayout so the final store is lane-dense.
    z = lax.dot_general(w2_ref[...], h, (((1,), (1,)), ((), ())),
                        preferred_element_type=jnp.float32)   # (1, TB)
    z = z + b2_ref[0, 0]                                 # SMEM scalar bias

    # Exact sigmoid: exp on the EUP; the divide lowers via reciprocal + mul.
    o_ref[0] = (1.0 / (1.0 + jnp.exp(-z))).astype(o_ref.dtype)


def _round8(n):
    return ((n + 7) // 8) * 8


def neural_net_forward(x, w1, b1, w2, b2, *, block_b=1024):
    """x: (B, D); w1: (D, H); b1: (1, H); w2: (1, H); b2: (1, 1) -> (B, 1) f32."""
    B, D = x.shape
    H = w1.shape[1]
    assert w1.shape == (D, H) and b1.shape == (1, H)
    assert w2.shape == (1, H) and b2.shape == (1, 1)

    # Batch tile: multiple of 8 sublanes, as large as block_b.  When the batch
    # can hold at least two tiles, split it so the "parallel" grid axis has
    # >=2 steps (lets v7x shard the batch across both TensorCores); on v5e/v6e
    # the extra grid step costs ~0.35us, i.e. noise.
    b8 = _round8(B)
    target = pl.cdiv(b8, 2) if b8 >= 16 else b8
    tb = max(8, min(block_b, _round8(target)))
    nt = pl.cdiv(B, tb)
    # Note: the last tile may be partial.  Its tail rows read unspecified
    # values, but each output lane depends only on its own row, and those tail
    # lanes are dropped by the [:B] slice below.

    out = pl.pallas_call(
        _mlp_kernel,
        out_shape=jax.ShapeDtypeStruct((nt, 1, tb), jnp.float32),
        grid=(nt,),
        in_specs=[
            pl.BlockSpec((tb, D), lambda i: (i, 0)),             # x tiles stream
            pl.BlockSpec((D, H), lambda i: (0, 0)),              # w1 resident
            pl.BlockSpec((1, H), lambda i: (0, 0)),              # b1 resident
            pl.BlockSpec((1, H), lambda i: (0, 0)),              # w2 resident
            pl.BlockSpec(memory_space=pltpu.MemorySpace.SMEM),   # b2 scalar
        ],
        out_specs=pl.BlockSpec((1, 1, tb), lambda i: (i, 0, 0)),  # lane-dense rows
        compiler_params=pltpu.CompilerParams(
            dimension_semantics=("parallel",),
        ),
    )(x, w1, b1, w2, b2)

    # Row-major flatten of (nt, 1, tb) is batch order; drop any padded tail.
    return out.reshape(nt * tb, 1)[:B]


def init_params(key, input_size, hidden_size):
    """Mimics nn.Linear's U(-1/sqrt(fan_in), 1/sqrt(fan_in)) init."""
    k1, k2, k3, k4 = jax.random.split(key, 4)
    bound1 = 1.0 / float(input_size) ** 0.5
    bound2 = 1.0 / float(hidden_size) ** 0.5
    w1 = jax.random.uniform(k1, (input_size, hidden_size), jnp.float32, -bound1, bound1)
    b1 = jax.random.uniform(k2, (1, hidden_size), jnp.float32, -bound1, bound1)
    w2 = jax.random.uniform(k3, (1, hidden_size), jnp.float32, -bound2, bound2)
    b2 = jax.random.uniform(k4, (1, 1), jnp.float32, -bound2, bound2)
    return w1, b1, w2, b2


if __name__ == "__main__":
    input_size = 16
    hidden_size = 32

    key = jax.random.PRNGKey(0)
    kx, kp = jax.random.split(key)
    w1, b1, w2, b2 = init_params(kp, input_size, hidden_size)

    # batch=8   -> single tile (tile == batch)
    # batch=200 -> two tiles of 104; second tile is partial (exercises the
    #              grid, the lane-dense output path, and tail-row handling).
    for batch in (8, 200):
        x = jax.random.normal(jax.random.fold_in(kx, batch),
                              (batch, input_size), dtype=jnp.float32)
        y_pred = neural_net_forward(x, w1, b1, w2, b2)
        jax.block_until_ready(y_pred)

        # Pure-JAX reference (same exact-sigmoid formulation).
        h_ref = jnp.maximum(x @ w1 + b1, 0.0)
        z_ref = jnp.sum(h_ref * w2, axis=-1, keepdims=True) + b2[0, 0]
        y_ref = 1.0 / (1.0 + jnp.exp(-z_ref))
        assert y_pred.shape == (batch, 1)
        assert jnp.allclose(y_pred, y_ref, atol=1e-5, rtol=1e-5), (
            f"mismatch vs reference (batch={batch})")

    print("KERNEL_OK")
</pallas_src>

<mosaic_0001>
module attributes {stable_mosaic.version = 11 : i64} {
  func.func @_mlp_kernel(%arg0: i32, %arg1: memref<8x16xf32, #tpu.memory_space<vmem>>, %arg2: memref<16x32xf32, #tpu.memory_space<vmem>>, %arg3: memref<1x32xf32, #tpu.memory_space<vmem>>, %arg4: memref<1x32xf32, #tpu.memory_space<vmem>>, %arg5: memref<1x1xf32, #tpu.memory_space<smem>>, %arg6: memref<1x1x8xf32, #tpu.memory_space<vmem>>) attributes {dimension_semantics = [#tpu.dimension_semantics<parallel>], iteration_bounds = array<i64: 1>, scalar_prefetch = 0 : i64, scratch_operands = 0 : i64, tpu.core_type = #tpu.core_type<tc>, window_params = [{transform_indices = @transform_0, window_bounds = array<i64: 8, 16>}, {pipeline_mode = #tpu.pipeline_mode<synchronous>, transform_indices = @transform_1, window_bounds = array<i64: 16, 32>}, {pipeline_mode = #tpu.pipeline_mode<synchronous>, transform_indices = @transform_2, window_bounds = array<i64: 1, 32>}, {pipeline_mode = #tpu.pipeline_mode<synchronous>, transform_indices = @transform_3, window_bounds = array<i64: 1, 32>}, {transform_indices = @transform_4, window_bounds = array<i64: 1, 1>}, {transform_indices = @transform_5, window_bounds = array<i64: 1, 1, 8>}]} {
    %c0 = arith.constant 0 : index
    %c0_0 = arith.constant 0 : index
    %0 = vector.load %arg1[%c0, %c0_0] : memref<8x16xf32, #tpu.memory_space<vmem>>, vector<8x16xf32>
    %c0_1 = arith.constant 0 : index
    %c0_2 = arith.constant 0 : index
    %1 = vector.load %arg2[%c0_1, %c0_2] : memref<16x32xf32, #tpu.memory_space<vmem>>, vector<16x32xf32>
    %cst = arith.constant dense<0.000000e+00> : vector<8x32xf32>
    %2 = tpu.matmul %0, %1, %cst {dimension_numbers = #tpu.dot_dimension_numbers<[1], [0], [0], [1], [0, 0, 1, 1], [], []>} : vector<8x16xf32>, vector<16x32xf32>, vector<8x32xf32> -> vector<8x32xf32>
    %c0_3 = arith.constant 0 : index
    %c0_4 = arith.constant 0 : index
    %3 = vector.load %arg3[%c0_3, %c0_4] : memref<1x32xf32, #tpu.memory_space<vmem>>, vector<1x32xf32>
    %4 = vector.broadcast %3 : vector<1x32xf32> to vector<8x32xf32>
    %5 = arith.addf %2, %4 : vector<8x32xf32>
    %cst_5 = arith.constant 0.000000e+00 : f32
    %6 = vector.broadcast %cst_5 : f32 to vector<8x32xf32>
    %7 = arith.maximumf %5, %6 : vector<8x32xf32>
    %c0_6 = arith.constant 0 : index
    %c0_7 = arith.constant 0 : index
    %8 = vector.load %arg4[%c0_6, %c0_7] : memref<1x32xf32, #tpu.memory_space<vmem>>, vector<1x32xf32>
    %cst_8 = arith.constant dense<0.000000e+00> : vector<1x8xf32>
    %9 = tpu.matmul %8, %7, %cst_8 {dimension_numbers = #tpu.dot_dimension_numbers<[1], [1], [0], [0], [0, 0, 1, 0], [], []>} : vector<1x32xf32>, vector<8x32xf32>, vector<1x8xf32> -> vector<1x8xf32>
    %c0_9 = arith.constant 0 : index
    %c0_10 = arith.constant 0 : index
    %10 = memref.load %arg5[%c0_9, %c0_10] : memref<1x1xf32, #tpu.memory_space<smem>>
    %11 = vector.broadcast %10 : f32 to vector<1x8xf32>
    %12 = arith.addf %9, %11 : vector<1x8xf32>
    %cst_11 = arith.constant 0.000000e+00 : f32
    %13 = vector.broadcast %cst_11 : f32 to vector<1x8xf32>
    %14 = arith.subf %13, %12 : vector<1x8xf32>
    %15 = math.exp %14 : vector<1x8xf32>
    %cst_12 = arith.constant 1.000000e+00 : f32
    %16 = vector.broadcast %cst_12 : f32 to vector<1x8xf32>
    %17 = arith.addf %16, %15 : vector<1x8xf32>
    %cst_13 = arith.constant 1.000000e+00 : f32
    %18 = vector.broadcast %cst_13 : f32 to vector<1x8xf32>
    %19 = arith.divf %18, %17 : vector<1x8xf32>
    %c0_14 = arith.constant 0 : index
    %c0_15 = arith.constant 0 : index
    %c0_16 = arith.constant 0 : index
    %20 = vector.load %arg6[%c0_14, %c0_15, %c0_16] : memref<1x1x8xf32, #tpu.memory_space<vmem>>, vector<1x1x8xf32>
    %21 = vector.shape_cast %20 : vector<1x1x8xf32> to vector<1x8xf32>
    %22 = vector.shape_cast %19 : vector<1x8xf32> to vector<1x1x8xf32>
    tpu.vector_store %arg6[%c0_14, %c0_15, %c0_16], %22 {strides = array<i32>} : memref<1x1x8xf32, #tpu.memory_space<vmem>>, vector<1x1x8xf32>,
    return
  }
  func.func @transform_0(%arg0: i32) -> (i32, i32) {
    %c0_i32 = arith.constant 0 : i32
    %c0_i32_0 = arith.constant 0 : i32
    return %arg0, %c0_i32 : i32, i32
  }
  func.func @transform_1(%arg0: i32) -> (i32, i32) {
    %c0_i32 = arith.constant 0 : i32
    %c0_i32_0 = arith.constant 0 : i32
    %c0_i32_1 = arith.constant 0 : i32
    return %c0_i32, %c0_i32_0 : i32, i32
  }
  func.func @transform_2(%arg0: i32) -> (i32, i32) {
    %c0_i32 = arith.constant 0 : i32
    %c0_i32_0 = arith.constant 0 : i32
    %c0_i32_1 = arith.constant 0 : i32
    return %c0_i32, %c0_i32_0 : i32, i32
  }
  func.func @transform_3(%arg0: i32) -> (i32, i32) {
    %c0_i32 = arith.constant 0 : i32
    %c0_i32_0 = arith.constant 0 : i32
    %c0_i32_1 = arith.constant 0 : i32
    return %c0_i32, %c0_i32_0 : i32, i32
  }
  func.func @transform_4(%arg0: i32) -> (i32, i32) {
    %c0_i32 = arith.constant 0 : i32
    %c0_i32_0 = arith.constant 0 : i32
    %c0_i32_1 = arith.constant 0 : i32
    return %c0_i32, %c0_i32_0 : i32, i32
  }
  func.func @transform_5(%arg0: i32) -> (i32, i32, i32) {
    %c0_i32 = arith.constant 0 : i32
    %c0_i32_0 = arith.constant 0 : i32
    %c0_i32_1 = arith.constant 0 : i32
    return %arg0, %c0_i32, %c0_i32_0 : i32, i32, i32
  }
}

</mosaic_0001>

<llo_original>
// kernel: tpu_custom_call.1
$region0: #{tpu_custom_call.1}
  #allocation0 [shape = 'u32[]', space=smem, size = 0x4, offset = 0x4, fixed_abs, tag = 'smem constant byte address 0x4 - core index']
  #allocation1 [shape = 'u32[144,128]{1,0:T(1,128)}', space=vmem, size = 0x12000, scoped, tag = 'internal scratch']
  #allocation2 [shape = 'f32[1,1]{1,0:T(1,128)S(6)}', space=smem, size = 0x200, scoped, tag = 'scoped memory for tpu_custom_call.1']
  %s0 = inlined_call_operand.hbm [shape: f32[8,16], index: 0, kind: input, shape index: {}]
  %s1 = inlined_call_operand.hbm [shape: f32[16,32], index: 1, kind: input, shape index: {}]
  %s2 = inlined_call_operand.vmem [shape: f32[1,32], index: 2, kind: input, shape index: {}]
  %s3 = inlined_call_operand.vmem [shape: f32[1,32], index: 3, kind: input, shape index: {}]
  %s4 = inlined_call_operand.<no memory space> [shape: f32[1,1], index: 4, kind: input, shape index: {}]
  %s5 = inlined_call_operand.hbm [shape: f32[1,1,8], index: 5, kind: output, shape index: {}]
  %s6 = sld [smem:[#allocation0]]
  $region38: #{tpu_custom_call.1} parent=0
    _
  %s8 = ssub.s32 1, %s6
  %s9 = scalar_select 0, %s8, %s6
  %10 = sst [smem:[#allocation2]] %s4
  $region1: #{tpu_custom_call.1} parent=0
    #allocation3 [shape = 'u8[4096]{0}', space=vmem, size = 0x1000, scoped, tag = 'input window, operand 0, single buffered']
    #allocation4 [shape = 's32[1]{0}', space=sflag, size = 0x4, scoped, tag = 'scoped memory for tpu_custom_call.1']
    #allocation5 [shape = 's32[1]{0}', space=sflag, size = 0x4, scoped, tag = 'scoped memory for tpu_custom_call.1']
    #allocation6 [shape = 'u8[8192]{0}', space=vmem, size = 0x2000, scoped, tag = 'input window, operand 1, single buffered']
    #allocation7 [shape = 's32[1]{0}', space=sflag, size = 0x4, scoped, tag = 'scoped memory for tpu_custom_call.1']
    #allocation8 [shape = 'u8[512]{0}', space=vmem, size = 0x400, scoped, tag = 'output window, operand 0, single buffered']
    %11 = vsyncpa [#allocation4], 0
    %12 = vsyncpa [#allocation7], 0
    %13 = vsyncpa [#allocation5], 0
    // Predicated region
    $region2: #{tpu_custom_call.1} parent=1 // pred_check
      _
    $region3: #{tpu_custom_call.1} parent=1 // pred_check_branch
      %15 = sbr.rel (0) target = $region5
    $region4: #{tpu_custom_call.1} parent=1 // pred_region
      %s17 = ssub.s32 128, 128
      %18 = vsyncadd [#allocation4], %s17
      %s20 = sshll.u32 [#allocation3], 4
      %s21 = int_to_ptr.vmem [resolvable:$true] %s20
      %23 = dma.hbm_to_vmem [thread:$0]  %s0, 128, %s21, [#allocation4]
    $region5: #{tpu_custom_call.1} parent=1 // pred_fallthru
      _
    // Predicated region
    $region6: #{tpu_custom_call.1} parent=1 // pred_check
      _
    $region7: #{tpu_custom_call.1} parent=1 // pred_check_branch
      %25 = sbr.rel (0) target = $region9
    $region8: #{tpu_custom_call.1} parent=1 // pred_region
      %s27 = ssub.s32 256, 256
      %28 = vsyncadd [#allocation7], %s27
      %s29 = sshll.u32 [#allocation6], 4
      %s30 = int_to_ptr.vmem [resolvable:$true] %s29
      %35 = dma.hbm_to_vmem [thread:$0]  %s1, 256, %s30, [#allocation7], 128, 128, 8
    $region9: #{tpu_custom_call.1} parent=1 // pred_fallthru
      _
    // Predicated region
    $region10: #{tpu_custom_call.1} parent=1 // pred_check
      _
    $region11: #{tpu_custom_call.1} parent=1 // pred_check_branch
      %37 = sbr.rel (0) target = $region13
    $region12: #{tpu_custom_call.1} parent=1 // pred_region
      _
    $region13: #{tpu_custom_call.1} parent=1 // pred_fallthru
      _
    // Predicated region
    $region14: #{tpu_custom_call.1} parent=1 // pred_check
      _
    $region15: #{tpu_custom_call.1} parent=1 // pred_check_branch
      %39 = sbr.rel (0) target = $region17
    $region16: #{tpu_custom_call.1} parent=1 // pred_region
      _
    $region17: #{tpu_custom_call.1} parent=1 // pred_fallthru
      _
    // Predicated region
    $region18: #{tpu_custom_call.1} parent=1 // pred_check
      _
    $region19: #{tpu_custom_call.1} parent=1 // pred_check_branch
      %41 = sbr.rel (0) target = $region21
    $region20: #{tpu_custom_call.1} parent=1 // pred_region
      _
    $region21: #{tpu_custom_call.1} parent=1 // pred_fallthru
      _
    // Predicated region
    $region22: #{tpu_custom_call.1} parent=1 // pred_check
      _
    $region23: #{tpu_custom_call.1} parent=1 // pred_check_branch
      %43 = sbr.rel (0) target = $region25
    $region24: #{tpu_custom_call.1} parent=1 // pred_region
      %44 = dma.done [#allocation4], 128
    $region25: #{tpu_custom_call.1} parent=1 // pred_fallthru
      _
    // Predicated region
    $region26: #{tpu_custom_call.1} parent=1 // pred_check
      _
    $region27: #{tpu_custom_call.1} parent=1 // pred_check_branch
      %46 = sbr.rel (0) target = $region29
    $region28: #{tpu_custom_call.1} parent=1 // pred_region
      %47 = dma.done [#allocation7], 256
    $region29: #{tpu_custom_call.1} parent=1 // pred_fallthru
      _
    %v48 = vld [vmem:[#allocation3] sm:$0xff]
    %v49 = vld [vmem:[#allocation6] sm:$0xff]
    %v50 = vld [vmem:[#allocation6 + $0x8] sm:$0xff]
    %v51 = vld [vmem:[%s2] sm:$0x1]
    %v53 = vlaneseq
    %v54 = vshrl.u32 %v53, 7
    %v55 = vsub.s32 0, %v54
    %v56 = vrot.slane %v51, %v55
    %vm58 = vcmask 130048
    %v60 = vsel %vm58, %v48, 0
    %62 = vmatprep.subr.mxu0 0.0
    %63 = vmatpush1.msra.mxu0 %v49
    %64 = vmatprep.subr.mxu0 0.0
    %65 = vmatpush1.msra.mxu0 %v50
    %66 = vmatprep.subr.mxu0 0.0
    %67 = vmatpush1.msra.mxu0 0.0
    %68 = vmatprep.subr.mxu0 0.0
    %69 = vmatpush1.msra.mxu0 0.0
    %70 = vmatprep.subr.mxu0 0.0
    %71 = vmatpush1.msra.mxu0 0.0
    %72 = vmatprep.subr.mxu0 0.0
    %73 = vmatpush1.msra.mxu0 0.0
    %74 = vmatprep.subr.mxu0 0.0
    %75 = vmatpush1.msra.mxu0 0.0
    %76 = vmatprep.subr.mxu0 0.0
    %77 = vmatpush1.msra.mxu0 0.0
    %78 = vmatprep.subr.mxu0 0.0
    %79 = vmatpush1.msra.mxu0 0.0
    %80 = vmatprep.subr.mxu0 0.0
    %81 = vmatpush1.msra.mxu0 0.0
    %82 = vmatprep.subr.mxu0 0.0
    %83 = vmatpush1.msra.mxu0 0.0
    %84 = vmatprep.subr.mxu0 0.0
    %85 = vmatpush1.msra.mxu0 0.0
    %86 = vmatprep.subr.mxu0 0.0
    %87 = vmatpush1.msra.mxu0 0.0
    %88 = vmatprep.subr.mxu0 0.0
    %89 = vmatpush1.msra.mxu0 0.0
    %90 = vmatprep.subr.mxu0 0.0
    %91 = vmatpush1.msra.mxu0 0.0
    %92 = vmatprep.subr.mxu0 0.0
    %93 = vmatpush1.msra.mxu0 0.0
    %94 = vmatprep.subr.mxu0 0.0
    %95 = vmatpush1.msra.mxu0 0.0
    %96 = vmatprep.subr.mxu0 0.0
    %97 = vmatpush1.msra.mxu0 0.0
    %98 = vmatprep.subr.mxu0 0.0
    %99 = vmatpush1.msra.mxu0 0.0
    %100 = vmatprep.subr.mxu0 0.0
    %101 = vmatpush1.msra.mxu0 0.0
    %102 = vmatprep.subr.mxu0 0.0
    %103 = vmatpush1.msra.mxu0 0.0
    %104 = vmatprep.subr.mxu0 0.0
    %105 = vmatpush1.msra.mxu0 0.0
    %106 = vmatprep.subr.mxu0 0.0
    %107 = vmatpush1.msra.mxu0 0.0
    %108 = vmatprep.subr.mxu0 0.0
    %109 = vmatpush1.msra.mxu0 0.0
    %110 = vmatprep.subr.mxu0 0.0
    %111 = vmatpush1.msra.mxu0 0.0
    %112 = vmatprep.subr.mxu0 0.0
    %113 = vmatpush1.msra.mxu0 0.0
    %114 = vmatprep.subr.mxu0 0.0
    %115 = vmatpush1.msra.mxu0 0.0
    %116 = vmatprep.subr.mxu0 0.0
    %117 = vmatpush1.msra.mxu0 0.0
    %118 = vmatprep.subr.mxu0 0.0
    %119 = vmatpush1.msra.mxu0 0.0
    %120 = vmatprep.subr.mxu0 0.0
    %121 = vmatpush1.msra.mxu0 0.0
    %122 = vmatprep.subr.mxu0 0.0
    %123 = vmatpush1.msra.mxu0 0.0
    %124 = vmatprep.subr.mxu0 0.0
    %125 = vmatpush1.msra.mxu0 0.0
    %126 = vmatprep.mubr.f32.mxu0 0.0
    %127 = vmatmul.mubr.f32.gmra.mrb[0].mxu0 %v60
    %v128 = vpop.f32.mrb[0].mxu0
    %v129 = vadd.f32 %v56, %v128
    %v130 = vpop.f32.mrb[0].mxu0
    %131 = vdwg.mxu0
    %v132 = vmax.f32 %v129, 0.0
    %v133 = vld [vmem:[%s3] sm:$0x1]
    %s134 = sld [smem:[#allocation2]]
    %v135 = vstv %s134
    %vm136 = vcmask 261120
    %v138 = vsel %vm136, %v133, 0
    %v141 = vsel %vm136, %v132, 0
    %143 = vmatprep.subr.mxu0 0.0
    %144 = vmatpush1.xpose.msra.mxu0 %v141
    %145 = vmatprep.subr.mxu0 0.0
    %146 = vmatpush1.xpose.msra.mxu0 0.0
    %147 = vmatprep.subr.mxu0 0.0
    %148 = vmatpush1.xpose.msra.mxu0 0.0
    %149 = vmatprep.subr.mxu0 0.0
    %150 = vmatpush1.xpose.msra.mxu0 0.0
    %151 = vmatprep.subr.mxu0 0.0
    %152 = vmatpush1.xpose.msra.mxu0 0.0
    %153 = vmatprep.subr.mxu0 0.0
    %154 = vmatpush1.xpose.msra.mxu0 0.0
    %155 = vmatprep.subr.mxu0 0.0
    %156 = vmatpush1.xpose.msra.mxu0 0.0
    %157 = vmatprep.subr.mxu0 0.0
    %158 = vmatpush1.xpose.msra.mxu0 0.0
    %159 = vmatprep.subr.mxu0 0.0
    %160 = vmatpush1.xpose.msra.mxu0 0.0
    %161 = vmatprep.subr.mxu0 0.0
    %162 = vmatpush1.xpose.msra.mxu0 0.0
    %163 = vmatprep.subr.mxu0 0.0
    %164 = vmatpush1.xpose.msra.mxu0 0.0
    %165 = vmatprep.subr.mxu0 0.0
    %166 = vmatpush1.xpose.msra.mxu0 0.0
    %167 = vmatprep.subr.mxu0 0.0
    %168 = vmatpush1.xpose.msra.mxu0 0.0
    %169 = vmatprep.subr.mxu0 0.0
    %170 = vmatpush1.xpose.msra.mxu0 0.0
    %171 = vmatprep.subr.mxu0 0.0
    %172 = vmatpush1.xpose.msra.mxu0 0.0
    %173 = vmatprep.subr.mxu0 0.0
    %174 = vmatpush1.xpose.msra.mxu0 0.0
    %175 = vmatprep.subr.mxu0 0.0
    %176 = vmatpush1.xpose.msra.mxu0 0.0
    %177 = vmatprep.subr.mxu0 0.0
    %178 = vmatpush1.xpose.msra.mxu0 0.0
    %179 = vmatprep.subr.mxu0 0.0
    %180 = vmatpush1.xpose.msra.mxu0 0.0
    %181 = vmatprep.subr.mxu0 0.0
    %182 = vmatpush1.xpose.msra.mxu0 0.0
    %183 = vmatprep.subr.mxu0 0.0
    %184 = vmatpush1.xpose.msra.mxu0 0.0
    %185 = vmatprep.subr.mxu0 0.0
    %186 = vmatpush1.xpose.msra.mxu0 0.0
    %187 = vmatprep.subr.mxu0 0.0
    %188 = vmatpush1.xpose.msra.mxu0 0.0
    %189 = vmatprep.subr.mxu0 0.0
    %190 = vmatpush1.xpose.msra.mxu0 0.0
    %191 = vmatprep.subr.mxu0 0.0
    %192 = vmatpush1.xpose.msra.mxu0 0.0
    %193 = vmatprep.subr.mxu0 0.0
    %194 = vmatpush1.xpose.msra.mxu0 0.0
    %195 = vmatprep.subr.mxu0 0.0
    %196 = vmatpush1.xpose.msra.mxu0 0.0
    %197 = vmatprep.subr.mxu0 0.0
    %198 = vmatpush1.xpose.msra.mxu0 0.0
    %199 = vmatprep.subr.mxu0 0.0
    %200 = vmatpush1.xpose.msra.mxu0 0.0
    %201 = vmatprep.subr.mxu0 0.0
    %202 = vmatpush1.xpose.msra.mxu0 0.0
    %203 = vmatprep.subr.mxu0 0.0
    %204 = vmatpush1.xpose.msra.mxu0 0.0
    %205 = vmatprep.subr.mxu0 0.0
    %206 = vmatpush1.xpose.msra.mxu0 0.0
    %207 = vmatprep.mubr.f32.mxu0 0.0
    %208 = vmatmul.mubr.f32.gmra.mrb[0].mxu0 %v138
    %v209 = vpop.f32.mrb[0].mxu0
    %v210 = vadd.f32 %v135, %v209
    %v211 = vpop.f32.mrb[0].mxu0
    %212 = vdwg.mxu0
    %v213 = vsub.f32 0.0, %v210
    %v214 = vmul.f32 %v213, 1.442695
    %v215 = vpow.pop %v214
    %v216 = vadd.f32 %v215, 1.0
    %v217 = vrcp.pop %v216
    %v218 = vmul.f32 1.0, %v217
    %vm219 = vcmask 57344
    %220 = vst.msk [vmem:[#allocation8] sm:$0x1] %vm219, %v218
    // Predicated region
    $region30: #{tpu_custom_call.1} parent=1 // pred_check
      _
    $region31: #{tpu_custom_call.1} parent=1 // pred_check_branch
      %222 = sbr.rel (0) target = $region33
    $region32: #{tpu_custom_call.1} parent=1 // pred_region
      %s224 = ssub.s32 16, 16
      %225 = vsyncadd [#allocation5], %s224
      %s227 = sshll.u32 [#allocation8], 4
      %s228 = int_to_ptr.vmem [resolvable:$true] %s227
      %230 = dma.vmem_to_hbm [thread:$0]  %s228, 16, %s5, [#allocation5]
    $region33: #{tpu_custom_call.1} parent=1 // pred_fallthru
      _
    // Predicated region
    $region34: #{tpu_custom_call.1} parent=1 // pred_check
      _
    $region35: #{tpu_custom_call.1} parent=1 // pred_check_branch
      %232 = sbr.rel (0) target = $region37
    $region36: #{tpu_custom_call.1} parent=1 // pred_region
      %233 = dma.done [#allocation5], 16
    $region37: #{tpu_custom_call.1} parent=1 // pred_fallthru
      _
    %234 = vsyncpa [#allocation4], 1
    %235 = vsyncpa [#allocation7], 1
    %236 = vsyncpa [#allocation5], 1

</llo_original>
